<compile_context>
chip_gen: v5e
topology: v5e:2x2
jax: 0.10.0
libtpu: 0.0.40
codegen_flags: <defaults>
</compile_context>

<pallas_src>
import jax
import jax.numpy as jnp
from jax.experimental import pallas as pl
from jax.experimental.pallas import tpu as pltpu


# ---------------------------------------------------------------------------
# Kernels
# ---------------------------------------------------------------------------
def _linear_bias_kernel(x_ref, w_ref, b_ref, o_ref):
    # x_ref: (tm, H_in)   row slab of the flattened input
    # w_ref: (H_in, tn)   pre-transposed weight column block (resident along M)
    # b_ref: (1, tn)      f32 bias slice
    # o_ref: (tm, tn)     output tile
    y = jnp.dot(x_ref[...].astype(w_ref.dtype), w_ref[...],
                preferred_element_type=jnp.float32)
    o_ref[...] = (y + b_ref[...]).astype(o_ref.dtype)


def _linear_bias_ksplit_kernel(x_ref, w_ref, b_ref, o_ref, acc_ref):
    # Same GEMM, but the reduction (H_in) axis is tiled: grid axis 2 is the
    # innermost "arbitrary" K axis; acc_ref is an f32 VMEM accumulator.
    k = pl.program_id(2)

    @pl.when(k == 0)
    def _():
        acc_ref[...] = jnp.zeros_like(acc_ref)

    acc_ref[...] += jnp.dot(x_ref[...].astype(w_ref.dtype), w_ref[...],
                            preferred_element_type=jnp.float32)

    @pl.when(k == pl.num_programs(2) - 1)
    def _():
        o_ref[...] = (acc_ref[...] + b_ref[...]).astype(o_ref.dtype)


# ---------------------------------------------------------------------------
# Tiling / VMEM helpers
# ---------------------------------------------------------------------------
def _round_up(x, m):
    return ((x + m - 1) // m) * m


def _largest_aligned_divisor(n, target, align):
    """Largest divisor of n that is a multiple of `align` and <= target (0 if none)."""
    t = (min(target, n) // align) * align
    while t >= align:
        if n % t == 0:
            return t
        t -= align
    return 0


def _vmem_capacity_and_budget():
    """Per-generation VMEM capacity (128 MiB v5e/v6e, 64 MiB v7x) and a
    conservative budget for tile-size decisions."""
    cap = 64 * 1024 * 1024  # safe fallback on every generation
    try:
        info = pltpu.get_tpu_info()
        cap = int(getattr(info, "vmem_capacity_bytes", cap)) or cap
    except Exception:
        pass
    return cap, int(cap * 0.75)


def _working_set_bytes(tm, tn, tk, xbytes, wbytes, obytes, ksplit):
    """VMEM working-set estimate including (8,128) layout padding,
    double-buffering, and Mosaic internal-scratch headroom."""
    pad_tm = _round_up(tm, 8)
    pad_tn = _round_up(tn, 128)
    pad_tk = _round_up(tk, 128)
    ws = 2 * pad_tm * pad_tk * xbytes       # x slab (double-buffered)
    ws += 2 * pad_tk * pad_tn * wbytes      # weight block (double-buffered)
    ws += 2 * pad_tm * pad_tn * obytes      # output tile (double-buffered)
    ws += 2 * 8 * pad_tn * 4                # bias tile pads to 8 sublanes (f32)
    if ksplit:
        ws += pad_tm * pad_tn * 4           # f32 accumulator scratch
    ws += 2 * 1024 * 1024                   # compiler internal scratch headroom
    return ws


def _select_tiles(M, hidden, h_out, xbytes, wbytes, obytes, budget, m_align):
    """Pick (tm, tn, tk, ksplit).  Preference order:
       big tm -> resident weight (tn=h_out) -> 256/128-aligned tn -> K split."""
    tm0 = min(512, _round_up(M, m_align))
    tm_cands = [tm0] + [t for t in (256, 128, 64, 32) if t < tm0]

    tn_cands = [h_out] + [t for t in (512, 256, 128) if t < h_out]

    tk_split_cands = []
    for align in (256, 128):                # prefer 256-aligned K chunks (v6e/v7x MXU)
        for tgt in (2048, 1024, 512, 256):
            tk = _largest_aligned_divisor(hidden, tgt, align)
            if tk and tk < hidden and tk not in tk_split_cands:
                tk_split_cands.append(tk)

    for tm in tm_cands:
        for tn in tn_cands:
            # Prefer the full reduction axis (single MXU sweep, no accumulator).
            if _working_set_bytes(tm, tn, hidden, xbytes, wbytes, obytes, False) <= budget:
                return tm, tn, hidden, False
            for tk in tk_split_cands:
                if _working_set_bytes(tm, tn, tk, xbytes, wbytes, obytes, True) <= budget:
                    return tm, tn, tk, True
    # Last resort: smallest tiles, no K split, let the compiler cope.
    return tm_cands[-1], tn_cands[-1], hidden, False


# ---------------------------------------------------------------------------
# Parameter preparation (hoisted out of the per-call hot path)
# ---------------------------------------------------------------------------
def prepare_linear_params(weight, bias, compute_dtype=jnp.bfloat16):
    """One-time conversion of PyTorch nn.Linear params into kernel layout.

    weight: (H_out, H_in)  -> returns w_t (H_in, H_out) in compute_dtype
    bias:   (H_out,)       -> returns bias2d (1, H_out) float32
    Call this once at weight-load time so repeated forwards pay no transpose.
    """
    w = jnp.asarray(weight)
    if compute_dtype is not None:
        w = w.astype(compute_dtype)
    w_t = jnp.transpose(w)                               # (H_in, H_out)
    bias2d = jnp.asarray(bias).astype(jnp.float32).reshape(1, -1)
    return w_t, bias2d


# ---------------------------------------------------------------------------
# Forward wrapper == SequenceWarpper(nn.Linear(H, H), split).forward
# ---------------------------------------------------------------------------
def sequence_warpper_linear(x, w_t, bias2d, split=1):
    """x: (bsz, q_len, H_in); w_t: (H_in, H_out) pre-transposed; bias2d: (1, H_out).

    Splitting the sequence into `split` chunks, applying the Linear per chunk
    and concatenating is identical to one Linear over the flattened rows, so
    the split only shows up as the divisibility check below.
    """
    bsz, q_len, hidden = x.shape
    assert q_len % split == 0, "q_len must be divisible by split"
    h_in, h_out = w_t.shape
    assert h_in == hidden

    out_dtype = x.dtype
    cbytes = jnp.dtype(w_t.dtype).itemsize       # compute-dtype bytes (weights)
    xbytes = jnp.dtype(x.dtype).itemsize         # x streamed in its native dtype
    obytes = jnp.dtype(out_dtype).itemsize
    M = bsz * q_len

    cap, budget = _vmem_capacity_and_budget()
    m_align = max(8, 32 // max(cbytes, 1))       # 8 f32, 16 bf16, 32 int8/fp8

    tm, tn, tk, ksplit = _select_tiles(M, hidden, h_out,
                                       xbytes, cbytes, obytes, budget, m_align)

    n_tiles = pl.cdiv(h_out, tn)
    m_tiles = pl.cdiv(M, tm)

    # If x will be re-streamed (N-tiled), cast it to the compute dtype up front
    # so the repeated DMA traffic is halved; in the resident-weight case keep
    # the native dtype and let the kernel cast (no extra HBM pass).
    if n_tiles > 1 and x.dtype != w_t.dtype:
        x = x.astype(w_t.dtype)
        xbytes = cbytes

    x2d = x.reshape(M, hidden)

    ws = _working_set_bytes(tm, tn, tk, xbytes, cbytes, obytes, ksplit)
    vmem_limit = min(int(cap * 0.9), max(int(ws * 1.25), 32 * 1024 * 1024))

    x_read_bytes = M * hidden * xbytes
    w_read_bytes = hidden * h_out * cbytes
    w_reads = m_tiles if ksplit else 1           # weight resident along M unless K-split
    cost = pl.CostEstimate(
        flops=2 * M * hidden * h_out,
        transcendentals=0,
        bytes_accessed=(n_tiles * x_read_bytes        # x re-streamed per N block
                        + w_reads * w_read_bytes
                        + h_out * 4
                        + M * h_out * obytes),
    )

    if ksplit:
        k_tiles = hidden // tk                   # tk divides hidden by construction
        grid = (n_tiles, m_tiles, k_tiles)
        in_specs = [
            pl.BlockSpec((tm, tk), lambda n, m, k: (m, k)),      # x row slab
            pl.BlockSpec((tk, tn), lambda n, m, k: (k, n)),      # weight block
            pl.BlockSpec((1, tn), lambda n, m, k: (0, n)),       # bias slice
        ]
        out_specs = pl.BlockSpec((tm, tn), lambda n, m, k: (m, n))
        scratch = (pltpu.VMEM((tm, tn), jnp.float32),)
        kernel = _linear_bias_ksplit_kernel
        semantics = ("parallel", "parallel", "arbitrary")
    else:
        grid = (n_tiles, m_tiles)                # M innermost -> weight block resident
        in_specs = [
            pl.BlockSpec((tm, hidden), lambda n, m: (m, 0)),     # x row slab
            pl.BlockSpec((hidden, tn), lambda n, m: (0, n)),     # weight column block
            pl.BlockSpec((1, tn), lambda n, m: (0, n)),          # bias slice
        ]
        out_specs = pl.BlockSpec((tm, tn), lambda n, m: (m, n))
        scratch = ()
        kernel = _linear_bias_kernel
        semantics = ("parallel", "parallel")

    out2d = pl.pallas_call(
        kernel,
        out_shape=jax.ShapeDtypeStruct((M, h_out), out_dtype),
        grid_spec=pltpu.PrefetchScalarGridSpec(
            num_scalar_prefetch=0,
            grid=grid,
            in_specs=in_specs,
            out_specs=out_specs,
            scratch_shapes=scratch,
        ),
        compiler_params=pltpu.CompilerParams(
            dimension_semantics=semantics,
            vmem_limit_bytes=vmem_limit,
        ),
        cost_estimate=cost,
    )(x2d, w_t, bias2d)

    return out2d.reshape(bsz, q_len, h_out)


# ---------------------------------------------------------------------------
if __name__ == "__main__":
    # Small shapes consistent with the module: (batch, seq, hidden)
    batch, seq, hidden = 2, 16, 32
    split = 2

    key = jax.random.PRNGKey(0)
    kx, kw, kb = jax.random.split(key, 3)
    x = jax.random.normal(kx, (batch, seq, hidden), dtype=jnp.float32)
    # Deterministic synthetic nn.Linear(hidden, hidden) parameters.
    weight = jax.random.normal(kw, (hidden, hidden), dtype=jnp.float32) * 0.05
    bias = jax.random.normal(kb, (hidden,), dtype=jnp.float32) * 0.05

    # One-time (weight-load time) conversion: transpose + bf16 cast hoisted
    # out of the per-call hot path.
    w_t, bias2d = prepare_linear_params(weight, bias, compute_dtype=jnp.bfloat16)

    out = sequence_warpper_linear(x, w_t, bias2d, split=split)
    out = jax.block_until_ready(out)

    # Reference: split + per-chunk Linear + concat == one Linear over seq.
    # Compare against a bf16-input / f32-accumulate reference (the kernel uses
    # the bf16 MXU path with f32 accumulation and an f32 bias add).
    xr = x.astype(jnp.bfloat16).astype(jnp.float32)
    wr = weight.astype(jnp.bfloat16).astype(jnp.float32)
    ref = jnp.einsum("bsh,oh->bso", xr, wr) + bias

    assert out.shape == (batch, seq, hidden)
    assert out.dtype == x.dtype
    assert jnp.allclose(out.astype(jnp.float32), ref, atol=1e-2, rtol=1e-2)

    print("KERNEL_OK")
</pallas_src>

<mosaic_0001>
module attributes {stable_mosaic.version = 11 : i64} {
  func.func @_linear_bias_kernel(%arg0: i32, %arg1: i32, %arg2: memref<32x32xf32, #tpu.memory_space<vmem>>, %arg3: memref<32x32xbf16, #tpu.memory_space<vmem>>, %arg4: memref<1x32xf32, #tpu.memory_space<vmem>>, %arg5: memref<32x32xf32, #tpu.memory_space<vmem>>) attributes {dimension_semantics = [#tpu.dimension_semantics<parallel>, #tpu.dimension_semantics<parallel>], iteration_bounds = array<i64: 1, 1>, scalar_prefetch = 0 : i64, scratch_operands = 0 : i64, tpu.core_type = #tpu.core_type<tc>, window_params = [{transform_indices = @transform_0, window_bounds = array<i64: 32, 32>}, {transform_indices = @transform_1, window_bounds = array<i64: 32, 32>}, {transform_indices = @transform_2, window_bounds = array<i64: 1, 32>}, {transform_indices = @transform_3, window_bounds = array<i64: 32, 32>}]} {
    %c0 = arith.constant 0 : index
    %c0_0 = arith.constant 0 : index
    %0 = vector.load %arg2[%c0, %c0_0] : memref<32x32xf32, #tpu.memory_space<vmem>>, vector<32x32xf32>
    %1 = arith.truncf %0 : vector<32x32xf32> to vector<32x32xbf16>
    %c0_1 = arith.constant 0 : index
    %c0_2 = arith.constant 0 : index
    %2 = vector.load %arg3[%c0_1, %c0_2] : memref<32x32xbf16, #tpu.memory_space<vmem>>, vector<32x32xbf16>
    %cst = arith.constant dense<0.000000e+00> : vector<32x32xf32>
    %3 = tpu.matmul %1, %2, %cst {dimension_numbers = #tpu.dot_dimension_numbers<[1], [0], [0], [1], [0, 0, 1, 1], [], []>} : vector<32x32xbf16>, vector<32x32xbf16>, vector<32x32xf32> -> vector<32x32xf32>
    %c0_3 = arith.constant 0 : index
    %c0_4 = arith.constant 0 : index
    %4 = vector.load %arg4[%c0_3, %c0_4] : memref<1x32xf32, #tpu.memory_space<vmem>>, vector<1x32xf32>
    %5 = vector.broadcast %4 : vector<1x32xf32> to vector<32x32xf32>
    %6 = arith.addf %3, %5 : vector<32x32xf32>
    %c0_5 = arith.constant 0 : index
    %c0_6 = arith.constant 0 : index
    %7 = vector.load %arg5[%c0_5, %c0_6] : memref<32x32xf32, #tpu.memory_space<vmem>>, vector<32x32xf32>
    tpu.vector_store %arg5[%c0_5, %c0_6], %6 {strides = array<i32>} : memref<32x32xf32, #tpu.memory_space<vmem>>, vector<32x32xf32>,
    return
  }
  func.func @transform_0(%arg0: i32, %arg1: i32) -> (i32, i32) {
    %c0_i32 = arith.constant 0 : i32
    %c0_i32_0 = arith.constant 0 : i32
    return %arg1, %c0_i32 : i32, i32
  }
  func.func @transform_1(%arg0: i32, %arg1: i32) -> (i32, i32) {
    %c0_i32 = arith.constant 0 : i32
    %c0_i32_0 = arith.constant 0 : i32
    return %c0_i32, %arg0 : i32, i32
  }
  func.func @transform_2(%arg0: i32, %arg1: i32) -> (i32, i32) {
    %c0_i32 = arith.constant 0 : i32
    %c0_i32_0 = arith.constant 0 : i32
    return %c0_i32, %arg0 : i32, i32
  }
  func.func @transform_3(%arg0: i32, %arg1: i32) -> (i32, i32) {
    %c0_i32 = arith.constant 0 : i32
    return %arg1, %arg0 : i32, i32
  }
}

</mosaic_0001>

<llo_original>
// kernel: tpu_custom_call.1
$region0: #{tpu_custom_call.1}
  #allocation0 [shape = 'u32[]', space=smem, size = 0x4, offset = 0x4, fixed_abs, tag = 'smem constant byte address 0x4 - core index']
  #allocation1 [shape = 'u32[72,128]{1,0:T(1,128)}', space=vmem, size = 0x9000, scoped, tag = 'internal scratch']
  %s0 = inlined_call_operand.hbm [shape: f32[32,32], index: 0, kind: input, shape index: {}]
  %s1 = inlined_call_operand.hbm [shape: bf16[32,32], index: 1, kind: input, shape index: {}]
  %s2 = inlined_call_operand.vmem [shape: f32[1,32], index: 2, kind: input, shape index: {}]
  %s3 = inlined_call_operand.hbm [shape: f32[32,32], index: 3, kind: output, shape index: {}]
  %s4 = sld [smem:[#allocation0]]
  $region30: #{tpu_custom_call.1} parent=0
    _
  %s6 = ssub.s32 1, %s4
  %s7 = scalar_select 0, %s6, %s4
  $region1: #{tpu_custom_call.1} parent=0
    #allocation2 [shape = 'u8[16384]{0}', space=vmem, size = 0x4000, scoped, tag = 'input window, operand 0, single buffered']
    #allocation3 [shape = 's32[1]{0}', space=sflag, size = 0x4, scoped, tag = 'scoped memory for tpu_custom_call.1']
    #allocation4 [shape = 's32[1]{0}', space=sflag, size = 0x4, scoped, tag = 'scoped memory for tpu_custom_call.1']
    #allocation5 [shape = 'u8[8192]{0}', space=vmem, size = 0x2000, scoped, tag = 'input window, operand 1, single buffered']
    #allocation6 [shape = 's32[1]{0}', space=sflag, size = 0x4, scoped, tag = 'scoped memory for tpu_custom_call.1']
    #allocation7 [shape = 'u8[16384]{0}', space=vmem, size = 0x4000, scoped, tag = 'output window, operand 0, single buffered']
    %8 = vsyncpa [#allocation3], 0
    %9 = vsyncpa [#allocation6], 0
    %10 = vsyncpa [#allocation4], 0
    // Predicated region
    $region2: #{tpu_custom_call.1} parent=1 // pred_check
      _
    $region3: #{tpu_custom_call.1} parent=1 // pred_check_branch
      %12 = sbr.rel (0) target = $region5
    $region4: #{tpu_custom_call.1} parent=1 // pred_region
      %14 = vsyncadd [#allocation3], 0
      %s15 = sshll.u32 %s0, 4
      %s16 = int_to_ptr.hbm [resolvable:$true] %s15
      %s17 = sshll.u32 [#allocation2], 4
      %s18 = int_to_ptr.vmem [resolvable:$true] %s17
      %23 = dma.hbm_to_vmem [thread:$0]  %s16, 512, %s18, [#allocation3], 128, 128, 8
    $region5: #{tpu_custom_call.1} parent=1 // pred_fallthru
      _
    // Predicated region
    $region6: #{tpu_custom_call.1} parent=1 // pred_check
      _
    $region7: #{tpu_custom_call.1} parent=1 // pred_check_branch
      %25 = sbr.rel (0) target = $region9
    $region8: #{tpu_custom_call.1} parent=1 // pred_region
      %27 = vsyncadd [#allocation6], 0
      %s28 = sshll.u32 %s1, 4
      %s29 = int_to_ptr.hbm [resolvable:$true] %s28
      %s30 = sshll.u32 [#allocation5], 4
      %s31 = int_to_ptr.vmem [resolvable:$true] %s30
      %36 = dma.hbm_to_vmem [thread:$0]  %s29, 256, %s31, [#allocation6], 64, 64, 4
    $region9: #{tpu_custom_call.1} parent=1 // pred_fallthru
      _
    // Predicated region
    $region10: #{tpu_custom_call.1} parent=1 // pred_check
      _
    $region11: #{tpu_custom_call.1} parent=1 // pred_check_branch
      %38 = sbr.rel (0) target = $region13
    $region12: #{tpu_custom_call.1} parent=1 // pred_region
      _
    $region13: #{tpu_custom_call.1} parent=1 // pred_fallthru
      _
    // Predicated region
    $region14: #{tpu_custom_call.1} parent=1 // pred_check
      _
    $region15: #{tpu_custom_call.1} parent=1 // pred_check_branch
      %40 = sbr.rel (0) target = $region17
    $region16: #{tpu_custom_call.1} parent=1 // pred_region
      %42 = dma.done [#allocation3], 512
    $region17: #{tpu_custom_call.1} parent=1 // pred_fallthru
      _
    // Predicated region
    $region18: #{tpu_custom_call.1} parent=1 // pred_check
      _
    $region19: #{tpu_custom_call.1} parent=1 // pred_check_branch
      %44 = sbr.rel (0) target = $region21
    $region20: #{tpu_custom_call.1} parent=1 // pred_region
      %46 = dma.done [#allocation6], 256
    $region21: #{tpu_custom_call.1} parent=1 // pred_fallthru
      _
    %v48 = vld [vmem:[#allocation2] sm:$0xff]
    %v49 = vld [vmem:[#allocation2 + $0x8] sm:$0xff]
    %v50 = vld [vmem:[#allocation2 + $0x10] sm:$0xff]
    %v51 = vld [vmem:[#allocation2 + $0x18] sm:$0xff]
    %v52 = vpack.c.bf16 %v49, %v48
    %v53 = vpack.c.bf16 %v51, %v50
    %v54 = vld [vmem:[#allocation5] sm:$0xf]
    %v55 = vld [vmem:[#allocation5 + $0x4] sm:$0xf]
    %v56 = vld [vmem:[#allocation5 + $0x8] sm:$0xf]
    %v57 = vld [vmem:[#allocation5 + $0xc] sm:$0xf]
    %v58 = vld [vmem:[%s2] sm:$0x1]
    %v60 = vperm.slane %v58, 0
    %v66 = vunpack.c.l.b16 %v54
    %v67 = vunpack.c.l.b16 %v55
    %v68 = vunpack.c.l.b16 %v56
    %v69 = vunpack.c.l.b16 %v57
    %v70 = vpack.c.b16 %v67, %v66
    %v71 = vpack.c.b16 %v69, %v68
    %vm74 = vcmask 261120
    %v76 = vsel %vm74, %v52, 0
    %v79 = vsel %vm74, %v53, 0
    %81 = vmatpush.bf16.msra.mxu0 0
    %82 = vmatpush.bf16.msra.mxu0 0
    %83 = vmatpush.bf16.msra.mxu0 0
    %84 = vmatpush.bf16.msra.mxu0 0
    %85 = vmatpush.bf16.msra.mxu0 0
    %86 = vmatpush.bf16.msra.mxu0 0
    %87 = vmatpush.bf16.msra.mxu0 %v71
    %88 = vmatpush.bf16.msra.mxu0 %v70
    %89 = vmatmul.bf16.gmra.mxu0 %v76
    %v90 = vpop.f32.mrf.mxu0
    %v91 = vadd.f32 %v60, %v90
    %v92 = vpop.f32.mrf.mxu0
    %v93 = vadd.f32 %v60, %v92
    %94 = vmatmul.bf16.gmra.mxu0 %v79
    %v95 = vpop.f32.mrf.mxu0
    %v96 = vadd.f32 %v60, %v95
    %v97 = vpop.f32.mrf.mxu0
    %v98 = vadd.f32 %v60, %v97
    %99 = vdwg.mxu0
    %100 = vst.msk [vmem:[#allocation7] sm:$0xff] %vm74, %v91
    %101 = vst.msk [vmem:[#allocation7 + $0x8] sm:$0xff] %vm74, %v93
    %102 = vst.msk [vmem:[#allocation7 + $0x10] sm:$0xff] %vm74, %v96
    %103 = vst.msk [vmem:[#allocation7 + $0x18] sm:$0xff] %vm74, %v98
    // Predicated region
    $region22: #{tpu_custom_call.1} parent=1 // pred_check
      _
    $region23: #{tpu_custom_call.1} parent=1 // pred_check_branch
      %105 = sbr.rel (0) target = $region25
    $region24: #{tpu_custom_call.1} parent=1 // pred_region
      %107 = vsyncadd [#allocation4], 0
      %s108 = sshll.u32 [#allocation7], 4
      %s109 = int_to_ptr.vmem [resolvable:$true] %s108
      %s110 = sshll.u32 %s3, 4
      %s111 = int_to_ptr.hbm [resolvable:$true] %s110
      %116 = dma.vmem_to_hbm [thread:$0]  %s109, 512, %s111, [#allocation4], 128, 128, 8
    $region25: #{tpu_custom_call.1} parent=1 // pred_fallthru
      _
    // Predicated region
    $region26: #{tpu_custom_call.1} parent=1 // pred_check
      _
    $region27: #{tpu_custom_call.1} parent=1 // pred_check_branch
      %118 = sbr.rel (0) target = $region29
    $region28: #{tpu_custom_call.1} parent=1 // pred_region
      %120 = dma.done [#allocation4], 512
    $region29: #{tpu_custom_call.1} parent=1 // pred_fallthru
      _
    %121 = vsyncpa [#allocation3], 1
    %122 = vsyncpa [#allocation6], 1
    %123 = vsyncpa [#allocation4], 1

</llo_original>
